<compile_context>
chip_gen: v7x
topology: tpu7x:2x2x1
jax: 0.10.0
libtpu: 0.0.40
codegen_flags: <defaults>
</compile_context>

<pallas_src>
import math
import functools

import jax
import jax.numpy as jnp
import numpy as np
from jax import lax
from jax.experimental import pallas as pl
from jax.experimental.pallas import tpu as pltpu

# Safe on v5e/v6e (128 MiB physical) and v7x (64 MiB physical) scoped-VMEM budgets.
_VMEM_LIMIT = 48 * 1024 * 1024
# Fuse the output projection into the attention kernel only when Wo comfortably
# fits in VMEM (double-buffered) alongside the q/k/v/bias blocks and scratch.
_FUSE_WO_MAX_BYTES = 4 * 1024 * 1024


def _pick_tile(dim, target, align):
    """Largest tile <= target that divides dim and is `align`-aligned; else full dim."""
    if dim <= target:
        return dim
    t = (target // align) * align
    while t >= align:
        if dim % t == 0:
            return t
        t -= align
    return dim


# ----------------------------- tiled linear kernel -----------------------------

def _linear_kernel(x_ref, w_ref, b_ref, o_ref, acc_ref):
    kk = pl.program_id(2)

    @pl.when(kk == 0)
    def _():
        acc_ref[...] = jnp.zeros_like(acc_ref)

    acc_ref[...] += jnp.dot(x_ref[...], w_ref[...], preferred_element_type=jnp.float32)

    @pl.when(kk == pl.num_programs(2) - 1)
    def _():
        o_ref[...] = (acc_ref[...] + b_ref[...].astype(jnp.float32)).astype(o_ref.dtype)


def linear(x, w, b, *, tm=256, tn=256, tk=512):
    """x: (M, K) @ w: (K, N) + b: (N,) -> (M, N), tiled with a K-reduction accumulator."""
    M, K = x.shape
    N = w.shape[1]
    tm = _pick_tile(M, tm, 8)
    tn = _pick_tile(N, tn, 128)
    tk = _pick_tile(K, tk, 128)
    grid = (M // tm, N // tn, K // tk)
    b2 = b.reshape(1, N)

    itemsize = jnp.dtype(x.dtype).itemsize
    cost = pl.CostEstimate(
        flops=int(2 * M * N * K + M * N),
        transcendentals=0,
        bytes_accessed=int(itemsize * (M * K + K * N + M * N) + 4 * N),
    )

    return pl.pallas_call(
        _linear_kernel,
        out_shape=jax.ShapeDtypeStruct((M, N), x.dtype),
        grid=grid,
        in_specs=[
            pl.BlockSpec((tm, tk), lambda i, j, kk: (i, kk)),
            pl.BlockSpec((tk, tn), lambda i, j, kk: (kk, j)),
            pl.BlockSpec((1, tn), lambda i, j, kk: (0, j)),
        ],
        out_specs=pl.BlockSpec((tm, tn), lambda i, j, kk: (i, j)),
        scratch_shapes=[pltpu.VMEM((tm, tn), jnp.float32)],
        compiler_params=pltpu.CompilerParams(
            dimension_semantics=("parallel", "parallel", "arbitrary"),
            vmem_limit_bytes=_VMEM_LIMIT),
        cost_estimate=cost,
    )(x, w, b2)


# ----------------------------- flash attention kernel -----------------------------

def _attn_kernel(*refs, scale, num_heads, head_dim, has_bias, bias_heads, fuse_out):
    q_ref, k_ref, v_ref = refs[0], refs[1], refs[2]
    idx = 3
    bias_ref = None
    if has_bias:
        bias_ref = refs[idx]
        idx += 1
    wo_ref = bo_ref = None
    if fuse_out:
        wo_ref, bo_ref = refs[idx], refs[idx + 1]
        idx += 2
    o_ref = refs[idx]
    m_sc, l_sc, acc_sc = refs[idx + 1], refs[idx + 2], refs[idx + 3]

    ki = pl.program_id(2)

    @pl.when(ki == 0)
    def _():
        m_sc[...] = jnp.full_like(m_sc, -jnp.inf)
        l_sc[...] = jnp.zeros_like(l_sc)
        acc_sc[...] = jnp.zeros_like(acc_sc)

    # Keep the native input dtype for the MXU; accumulate in f32.
    # Scale q once per tile (torch: q = q * scale before the matmul) instead of
    # scaling every (tq, tk) score block per head per kv tile.
    q = q_ref[...] * scale   # (tq, H*D)
    k = k_ref[...]           # (tk, H*D)
    v = v_ref[...]           # (tk, H*D)

    for h in range(num_heads):
        lo, hi = h * head_dim, (h + 1) * head_dim

        # Contract head_dim of both operands directly (no explicit k.T / XLU transpose).
        s = lax.dot_general(q[:, lo:hi], k[:, lo:hi], (((1,), (1,)), ((), ())),
                            preferred_element_type=jnp.float32)
        if has_bias:
            s = s + bias_ref[0, h if bias_heads > 1 else 0].astype(jnp.float32)

        m_prev = m_sc[:, h:h + 1]
        m_new = jnp.maximum(m_prev, jnp.max(s, axis=-1, keepdims=True))
        alpha = jnp.exp(m_prev - m_new)
        p = jnp.exp(s - m_new)
        l_sc[:, h:h + 1] = alpha * l_sc[:, h:h + 1] + jnp.sum(p, axis=-1, keepdims=True)
        pv = jnp.dot(p.astype(v.dtype), v[:, lo:hi], preferred_element_type=jnp.float32)
        acc_sc[:, lo:hi] = alpha * acc_sc[:, lo:hi] + pv
        m_sc[:, h:h + 1] = m_new

    @pl.when(ki == pl.num_programs(2) - 1)
    def _():
        # One reciprocal over all heads at finalize (exact: negligible cost here).
        inv_l = pl.reciprocal(l_sc[...], approx=False)          # (tq, H)
        for h in range(num_heads):
            lo, hi = h * head_dim, (h + 1) * head_dim
            acc_sc[:, lo:hi] = acc_sc[:, lo:hi] * inv_l[:, h:h + 1]
        ctx = acc_sc[...]                                        # (tq, H*D), f32
        if fuse_out:
            out = jnp.dot(ctx, wo_ref[...].astype(jnp.float32),
                          preferred_element_type=jnp.float32)
            out = out + bo_ref[...].astype(jnp.float32)
            o_ref[...] = out.astype(o_ref.dtype)
        else:
            o_ref[...] = ctx.astype(o_ref.dtype)


def attention(qp, kp, vp, attn_bias, wo=None, bo=None, *, batch, seq_q, seq_k,
              num_heads, head_dim, scale):
    """qp/kp/vp: (B*S, H*D) projection slabs -> (B*Sq, H*D) context slab, or
    (B*Sq, hidden) when the output projection (wo, bo) is fused in."""
    HD = num_heads * head_dim
    fuse_out = wo is not None
    out_dim = int(wo.shape[1]) if fuse_out else HD

    tq = _pick_tile(seq_q, 128, 8)
    tk = _pick_tile(seq_k, 256, 128)
    n_q = seq_q // tq
    n_k = seq_k // tk
    has_bias = attn_bias is not None

    q_spec = pl.BlockSpec((tq, HD), lambda b, qi, ki: (b * n_q + qi, 0))
    kv_spec = pl.BlockSpec((tk, HD), lambda b, qi, ki: (b * n_k + ki, 0))
    o_spec = pl.BlockSpec((tq, out_dim), lambda b, qi, ki: (b * n_q + qi, 0))

    in_specs = [q_spec, kv_spec, kv_spec]
    inputs = [qp, kp, vp]
    bias_heads = 0
    bias_bytes = 0
    if has_bias:
        assert attn_bias.ndim == 4, "attn_bias must be [batch, head, seq_q, seq_k]"
        bias_b, bias_heads = attn_bias.shape[0], attn_bias.shape[1]
        # size-1 batch/head dims broadcast via index_map / in-kernel indexing; the
        # dense broadcast tensor is never materialized in HBM.
        bias_spec = pl.BlockSpec(
            (1, bias_heads, tq, tk),
            lambda b, qi, ki: (b if bias_b > 1 else 0, 0, qi, ki))
        in_specs.append(bias_spec)
        inputs.append(attn_bias)
        bias_bytes = int(attn_bias.size) * jnp.dtype(attn_bias.dtype).itemsize

    proj_flops = 0
    proj_bytes = 0
    if fuse_out:
        in_specs.append(pl.BlockSpec((HD, out_dim), lambda b, qi, ki: (0, 0)))
        in_specs.append(pl.BlockSpec((1, out_dim), lambda b, qi, ki: (0, 0)))
        inputs.append(wo)
        inputs.append(bo.reshape(1, out_dim))
        proj_flops = 2 * batch * seq_q * HD * out_dim + batch * seq_q * out_dim
        proj_bytes = int((wo.size + out_dim) * jnp.dtype(wo.dtype).itemsize)

    kernel = functools.partial(
        _attn_kernel, scale=scale, num_heads=num_heads, head_dim=head_dim,
        has_bias=has_bias, bias_heads=bias_heads, fuse_out=fuse_out)

    itemsize = jnp.dtype(qp.dtype).itemsize
    cost = pl.CostEstimate(
        flops=int(4 * batch * num_heads * seq_q * seq_k * head_dim
                  + 4 * batch * num_heads * seq_q * seq_k + proj_flops),
        transcendentals=int(batch * num_heads * seq_q * seq_k),
        bytes_accessed=int(itemsize * (batch * seq_q * HD + 2 * batch * seq_k * HD
                                       + batch * seq_q * out_dim)
                           + bias_bytes + proj_bytes),
    )

    return pl.pallas_call(
        kernel,
        out_shape=jax.ShapeDtypeStruct((batch * seq_q, out_dim), qp.dtype),
        grid=(batch, n_q, n_k),
        in_specs=in_specs,
        out_specs=o_spec,
        scratch_shapes=[
            pltpu.VMEM((tq, num_heads), jnp.float32),   # running max  m (per head)
            pltpu.VMEM((tq, num_heads), jnp.float32),   # running sum  l (per head)
            pltpu.VMEM((tq, HD), jnp.float32),          # unnormalized context acc
        ],
        compiler_params=pltpu.CompilerParams(
            dimension_semantics=("parallel", "parallel", "arbitrary"),
            vmem_limit_bytes=_VMEM_LIMIT),
        cost_estimate=cost,
    )(*inputs)


# ----------------------------- Module wrapper -----------------------------

class MultiHeadAttentionPallas:
    def __init__(self, hidden_size, attention_dropout, head_size, key, fuse_output=True):
        self.head_size = head_size
        self.att_size = hidden_size // head_size
        self.scale = self.att_size ** (-0.5)
        self.hidden_size = hidden_size
        self.fuse_output = fuse_output

        # nn.Linear-style deterministic init: U(-1/sqrt(fan_in), 1/sqrt(fan_in))
        def lin_params(k_, in_f, out_f):
            kw, kb = jax.random.split(k_)
            bound = 1.0 / math.sqrt(in_f)
            w = jax.random.uniform(kw, (in_f, out_f), jnp.float32, -bound, bound)
            b = jax.random.uniform(kb, (out_f,), jnp.float32, -bound, bound)
            return w, b

        ks = jax.random.split(key, 4)
        d_model = head_size * self.att_size
        self.wq, self.bq = lin_params(ks[0], hidden_size, d_model)
        self.wk, self.bk = lin_params(ks[1], hidden_size, d_model)
        self.wv, self.bv = lin_params(ks[2], hidden_size, d_model)
        self.wo, self.bo = lin_params(ks[3], d_model, hidden_size)
        # Pre-concatenated weights for the fused QKV (self-attention) and fused KV paths.
        self.wqkv = jnp.concatenate([self.wq, self.wk, self.wv], axis=1)
        self.bqkv = jnp.concatenate([self.bq, self.bk, self.bv], axis=0)
        self.wkv = jnp.concatenate([self.wk, self.wv], axis=1)
        self.bkv = jnp.concatenate([self.bk, self.bv], axis=0)

    def __call__(self, q, k, v, attn_bias=None):
        B, Sq, Hd = q.shape
        Sk = k.shape[1]
        H, D = self.head_size, self.att_size
        HD = H * D

        if (q is k) and (k is v):
            # Self-attention: read the activations once, one fused QKV matmul.
            qkv = linear(q.reshape(B * Sq, Hd), self.wqkv, self.bqkv)
            qp, kp, vp = qkv[:, :HD], qkv[:, HD:2 * HD], qkv[:, 2 * HD:]
        elif k is v:
            # Cross-attention with shared k/v source: fuse K/V projections.
            qp = linear(q.reshape(B * Sq, Hd), self.wq, self.bq)
            kv = linear(k.reshape(B * Sk, Hd), self.wkv, self.bkv)
            kp, vp = kv[:, :HD], kv[:, HD:]
        else:
            qp = linear(q.reshape(B * Sq, Hd), self.wq, self.bq)
            kp = linear(k.reshape(B * Sk, Hd), self.wk, self.bk)
            vp = linear(v.reshape(B * Sk, Hd), self.wv, self.bv)

        wo_bytes = int(self.wo.size) * jnp.dtype(self.wo.dtype).itemsize
        fuse_out = self.fuse_output and (wo_bytes <= _FUSE_WO_MAX_BYTES)

        # Flash attention directly on the (B*S, H*D) slabs: no head split/merge
        # transposes.  When Wo fits in VMEM, the output projection is fused into the
        # attention finalize, eliminating the HBM roundtrip of the context slab.
        if fuse_out:
            out2d = attention(qp, kp, vp, attn_bias, self.wo, self.bo,
                              batch=B, seq_q=Sq, seq_k=Sk,
                              num_heads=H, head_dim=D, scale=self.scale)
        else:
            ctx = attention(qp, kp, vp, attn_bias,
                            batch=B, seq_q=Sq, seq_k=Sk,
                            num_heads=H, head_dim=D, scale=self.scale)
            out2d = linear(ctx, self.wo, self.bo)

        return out2d.reshape(B, Sq, self.hidden_size)


# ----------------------------- reference (plain JAX) -----------------------------

def reference_forward(mod, q, k, v, attn_bias):
    B, Sq, Hd = q.shape
    Sk = k.shape[1]
    H, D = mod.head_size, mod.att_size
    qp = (q.reshape(B * Sq, Hd) @ mod.wq + mod.bq).reshape(B, Sq, H, D).transpose(0, 2, 1, 3)
    kp = (k.reshape(B * Sk, Hd) @ mod.wk + mod.bk).reshape(B, Sk, H, D).transpose(0, 2, 1, 3)
    vp = (v.reshape(B * Sk, Hd) @ mod.wv + mod.bv).reshape(B, Sk, H, D).transpose(0, 2, 1, 3)
    s = jnp.einsum("bhqd,bhkd->bhqk", qp * mod.scale, kp)
    if attn_bias is not None:
        s = s + attn_bias
    p = jax.nn.softmax(s, axis=-1)
    ctx = jnp.einsum("bhqk,bhkd->bhqd", p, vp).transpose(0, 2, 1, 3).reshape(B, Sq, H * D)
    return (ctx.reshape(B * Sq, H * D) @ mod.wo + mod.bo).reshape(B, Sq, mod.hidden_size)


# ----------------------------- main -----------------------------

if __name__ == "__main__":
    key = jax.random.PRNGKey(0)
    k_mod, k_q, k_k, k_v, k_b = jax.random.split(key, 5)

    batch, seq, hidden, heads = 2, 8, 32, 4
    mha = MultiHeadAttentionPallas(hidden_size=hidden, attention_dropout=0.0,
                                   head_size=heads, key=k_mod)

    q = jax.random.normal(k_q, (batch, seq, hidden), jnp.float32)
    k = jax.random.normal(k_k, (batch, seq, hidden), jnp.float32)
    v = jax.random.normal(k_v, (batch, seq, hidden), jnp.float32)
    attn_bias = jax.random.normal(k_b, (batch, heads, seq, seq), jnp.float32)

    # 1) distinct q/k/v with bias (fused output projection path)
    out = jax.block_until_ready(mha(q, k, v, attn_bias))
    ref = reference_forward(mha, q, k, v, attn_bias)
    np.testing.assert_allclose(np.asarray(out), np.asarray(ref), rtol=2e-3, atol=2e-3)

    # 2) self-attention (fused QKV projection), no bias
    out_sa = jax.block_until_ready(mha(q, q, q, None))
    ref_sa = reference_forward(mha, q, q, q, None)
    np.testing.assert_allclose(np.asarray(out_sa), np.asarray(ref_sa), rtol=2e-3, atol=2e-3)

    # 3) shared k/v source (fused KV projection)
    out_kv = jax.block_until_ready(mha(q, k, k, attn_bias))
    ref_kv = reference_forward(mha, q, k, k, attn_bias)
    np.testing.assert_allclose(np.asarray(out_kv), np.asarray(ref_kv), rtol=2e-3, atol=2e-3)

    # 4) unfused output projection fallback (large-Wo path)
    mha_uf = MultiHeadAttentionPallas(hidden_size=hidden, attention_dropout=0.0,
                                      head_size=heads, key=k_mod, fuse_output=False)
    out_uf = jax.block_until_ready(mha_uf(q, k, v, attn_bias))
    np.testing.assert_allclose(np.asarray(out_uf), np.asarray(ref), rtol=2e-3, atol=2e-3)

    print("KERNEL_OK")
</pallas_src>

<mosaic_0001>
module attributes {stable_mosaic.version = 11 : i64} {
  func.func @_linear_kernel(%arg0: i32, %arg1: i32, %arg2: i32, %arg3: memref<16x32xf32, #tpu.memory_space<vmem>>, %arg4: memref<32x32xf32, #tpu.memory_space<vmem>>, %arg5: memref<1x32xf32, #tpu.memory_space<vmem>>, %arg6: memref<16x32xf32, #tpu.memory_space<vmem>>, %arg7: memref<16x32xf32, #tpu.memory_space<vmem>>) attributes {dimension_semantics = [#tpu.dimension_semantics<parallel>, #tpu.dimension_semantics<parallel>, #tpu.dimension_semantics<arbitrary>], iteration_bounds = array<i64: 1, 1, 1>, scalar_prefetch = 0 : i64, scratch_operands = 1 : i64, tpu.core_type = #tpu.core_type<tc>, window_params = [{transform_indices = @transform_0, window_bounds = array<i64: 16, 32>}, {transform_indices = @transform_1, window_bounds = array<i64: 32, 32>}, {transform_indices = @transform_2, window_bounds = array<i64: 1, 32>}, {transform_indices = @transform_3, window_bounds = array<i64: 16, 32>}]} {
    %c0_i32 = arith.constant 0 : i32
    %0 = arith.cmpi eq, %arg2, %c0_i32 : i32
    %1 = arith.extui %0 : i1 to i32
    %c0_i32_0 = arith.constant 0 : i32
    %2 = arith.cmpi ne, %1, %c0_i32_0 : i32
    scf.if %2 {
      %cst_10 = arith.constant 0.000000e+00 : f32
      %12 = vector.broadcast %cst_10 : f32 to vector<16x32xf32>
      %c0_11 = arith.constant 0 : index
      %c0_12 = arith.constant 0 : index
      %13 = vector.load %arg7[%c0_11, %c0_12] : memref<16x32xf32, #tpu.memory_space<vmem>>, vector<16x32xf32>
      tpu.vector_store %arg7[%c0_11, %c0_12], %12 {strides = array<i32>} : memref<16x32xf32, #tpu.memory_space<vmem>>, vector<16x32xf32>,
    } else {
    }
    %c0 = arith.constant 0 : index
    %c0_1 = arith.constant 0 : index
    %3 = vector.load %arg7[%c0, %c0_1] : memref<16x32xf32, #tpu.memory_space<vmem>>, vector<16x32xf32>
    %c0_2 = arith.constant 0 : index
    %c0_3 = arith.constant 0 : index
    %4 = vector.load %arg3[%c0_2, %c0_3] : memref<16x32xf32, #tpu.memory_space<vmem>>, vector<16x32xf32>
    %c0_4 = arith.constant 0 : index
    %c0_5 = arith.constant 0 : index
    %5 = vector.load %arg4[%c0_4, %c0_5] : memref<32x32xf32, #tpu.memory_space<vmem>>, vector<32x32xf32>
    %cst = arith.constant dense<0.000000e+00> : vector<16x32xf32>
    %6 = tpu.matmul %4, %5, %cst {dimension_numbers = #tpu.dot_dimension_numbers<[1], [0], [0], [1], [0, 0, 1, 1], [], []>} : vector<16x32xf32>, vector<32x32xf32>, vector<16x32xf32> -> vector<16x32xf32>
    %7 = arith.addf %3, %6 : vector<16x32xf32>
    %c0_6 = arith.constant 0 : index
    %c0_7 = arith.constant 0 : index
    %8 = vector.load %arg7[%c0_6, %c0_7] : memref<16x32xf32, #tpu.memory_space<vmem>>, vector<16x32xf32>
    tpu.vector_store %arg7[%c0_6, %c0_7], %7 {strides = array<i32>} : memref<16x32xf32, #tpu.memory_space<vmem>>, vector<16x32xf32>,
    %c0_i32_8 = arith.constant 0 : i32
    %9 = arith.cmpi eq, %arg2, %c0_i32_8 : i32
    %10 = arith.extui %9 : i1 to i32
    %c0_i32_9 = arith.constant 0 : i32
    %11 = arith.cmpi ne, %10, %c0_i32_9 : i32
    scf.if %11 {
      %c0_10 = arith.constant 0 : index
      %c0_11 = arith.constant 0 : index
      %12 = vector.load %arg7[%c0_10, %c0_11] : memref<16x32xf32, #tpu.memory_space<vmem>>, vector<16x32xf32>
      %c0_12 = arith.constant 0 : index
      %c0_13 = arith.constant 0 : index
      %13 = vector.load %arg5[%c0_12, %c0_13] : memref<1x32xf32, #tpu.memory_space<vmem>>, vector<1x32xf32>
      %14 = vector.broadcast %13 : vector<1x32xf32> to vector<16x32xf32>
      %15 = arith.addf %12, %14 : vector<16x32xf32>
      %c0_14 = arith.constant 0 : index
      %c0_15 = arith.constant 0 : index
      %16 = vector.load %arg6[%c0_14, %c0_15] : memref<16x32xf32, #tpu.memory_space<vmem>>, vector<16x32xf32>
      tpu.vector_store %arg6[%c0_14, %c0_15], %15 {strides = array<i32>} : memref<16x32xf32, #tpu.memory_space<vmem>>, vector<16x32xf32>,
    } else {
    }
    return
  }
  func.func @transform_0(%arg0: i32, %arg1: i32, %arg2: i32) -> (i32, i32) {
    %c0_i32 = arith.constant 0 : i32
    return %arg0, %arg2 : i32, i32
  }
  func.func @transform_1(%arg0: i32, %arg1: i32, %arg2: i32) -> (i32, i32) {
    %c0_i32 = arith.constant 0 : i32
    return %arg2, %arg1 : i32, i32
  }
  func.func @transform_2(%arg0: i32, %arg1: i32, %arg2: i32) -> (i32, i32) {
    %c0_i32 = arith.constant 0 : i32
    %c0_i32_0 = arith.constant 0 : i32
    return %c0_i32, %arg1 : i32, i32
  }
  func.func @transform_3(%arg0: i32, %arg1: i32, %arg2: i32) -> (i32, i32) {
    %c0_i32 = arith.constant 0 : i32
    return %arg0, %arg1 : i32, i32
  }
}

</mosaic_0001>

<llo_original>
// kernel: tpu_custom_call.1
$region0: #{tpu_custom_call.1}
  #allocation0 [shape = 'u32[]', space=smem, size = 0x4, offset = 0x4, fixed_abs, tag = 'smem constant byte address 0x4 - core index']
  #allocation1 [shape = 'u32[144,128]{1,0:T(1,128)}', space=vmem, size = 0x12000, scoped, tag = 'internal scratch']
  #allocation2 [shape = 'f32[16,32]{1,0:T(8,128)}', space=vmem, size = 0x2000, scoped, tag = 'scratch operand']
  %s0 = inlined_call_operand.hbm [shape: f32[16,32], index: 0, kind: input, shape index: {}]
  %s1 = inlined_call_operand.hbm [shape: f32[32,32], index: 1, kind: input, shape index: {}]
  %s2 = inlined_call_operand.vmem [shape: f32[1,32], index: 2, kind: input, shape index: {}]
  %s3 = inlined_call_operand.hbm [shape: f32[16,32], index: 3, kind: output, shape index: {}]
  %s4 = sld [smem:[#allocation0]]
  $region38: #{tpu_custom_call.1} parent=0
    _
  %s6 = ssub.s32 1, %s4
  %s7 = scalar_select 0, %s6, %s4
  $region1: #{tpu_custom_call.1} parent=0
    #allocation3 [shape = 'u8[8192]{0}', space=vmem, size = 0x2000, scoped, tag = 'input window, operand 0, single buffered']
    #allocation4 [shape = 's32[1]{0}', space=sflag, size = 0x4, scoped, tag = 'scoped memory for tpu_custom_call.1']
    #allocation5 [shape = 's32[1]{0}', space=sflag, size = 0x4, scoped, tag = 'scoped memory for tpu_custom_call.1']
    #allocation6 [shape = 'u8[16384]{0}', space=vmem, size = 0x4000, scoped, tag = 'input window, operand 1, single buffered']
    #allocation7 [shape = 's32[1]{0}', space=sflag, size = 0x4, scoped, tag = 'scoped memory for tpu_custom_call.1']
    #allocation8 [shape = 'u8[8192]{0}', space=vmem, size = 0x2000, scoped, tag = 'output window, operand 0, single buffered']
    %8 = vsyncpa [#allocation4], 0
    %9 = vsyncpa [#allocation7], 0
    %10 = vsyncpa [#allocation5], 0
    // Predicated region
    $region2: #{tpu_custom_call.1} parent=1 // pred_check
      _
    $region3: #{tpu_custom_call.1} parent=1 // pred_check_branch
      %12 = sbr.rel (0) target = $region5
    $region4: #{tpu_custom_call.1} parent=1 // pred_region
      %s14 = ssub.s32 256, 256
      %15 = vsyncadd [#allocation4], %s14
      %s16 = sshll.u32 [#allocation3], 4
      %s17 = int_to_ptr.vmem [resolvable:$true] %s16
      %22 = dma.hbm_to_vmem [thread:$0]  %s0, 256, %s17, [#allocation4], 128, 128, 8
    $region5: #{tpu_custom_call.1} parent=1 // pred_fallthru
      _
    // Predicated region
    $region6: #{tpu_custom_call.1} parent=1 // pred_check
      _
    $region7: #{tpu_custom_call.1} parent=1 // pred_check_branch
      %24 = sbr.rel (0) target = $region9
    $region8: #{tpu_custom_call.1} parent=1 // pred_region
      %s26 = ssub.s32 512, 512
      %27 = vsyncadd [#allocation7], %s26
      %s28 = sshll.u32 [#allocation6], 4
      %s29 = int_to_ptr.vmem [resolvable:$true] %s28
      %34 = dma.hbm_to_vmem [thread:$0]  %s1, 512, %s29, [#allocation7], 128, 128, 8
    $region9: #{tpu_custom_call.1} parent=1 // pred_fallthru
      _
    // Predicated region
    $region10: #{tpu_custom_call.1} parent=1 // pred_check
      _
    $region11: #{tpu_custom_call.1} parent=1 // pred_check_branch
      %36 = sbr.rel (0) target = $region13
    $region12: #{tpu_custom_call.1} parent=1 // pred_region
      _
    $region13: #{tpu_custom_call.1} parent=1 // pred_fallthru
      _
    // Predicated region
    $region14: #{tpu_custom_call.1} parent=1 // pred_check
      _
    $region15: #{tpu_custom_call.1} parent=1 // pred_check_branch
      %38 = sbr.rel (0) target = $region17
    $region16: #{tpu_custom_call.1} parent=1 // pred_region
      %39 = dma.done [#allocation4], 256
    $region17: #{tpu_custom_call.1} parent=1 // pred_fallthru
      _
    // Predicated region
    $region18: #{tpu_custom_call.1} parent=1 // pred_check
      _
    $region19: #{tpu_custom_call.1} parent=1 // pred_check_branch
      %41 = sbr.rel (0) target = $region21
    $region20: #{tpu_custom_call.1} parent=1 // pred_region
      %42 = dma.done [#allocation7], 512
    $region21: #{tpu_custom_call.1} parent=1 // pred_fallthru
      _
    %p43 = scmp.eq.s32.totalorder 0, 0
    // Predicated region
    $region22: #{tpu_custom_call.1} parent=1 // pred_check
      %p44 = pneg %p43
    $region23: #{tpu_custom_call.1} parent=1 // pred_check_branch
      %46 = sbr.rel (%p44) target = $region25
    $region24: #{tpu_custom_call.1} parent=1 // pred_region
      %vm47 = vcmask 261120
      %48 = vst.msk [vmem:[#allocation2] sm:$0xff] %vm47, 0.0
      %49 = vst.msk [vmem:[#allocation2 + $0x8] sm:$0xff] %vm47, 0.0
    $region25: #{tpu_custom_call.1} parent=1 // pred_fallthru
      _
    %v50 = vld [vmem:[#allocation2] sm:$0xff]
    %v51 = vld [vmem:[#allocation2 + $0x8] sm:$0xff]
    %v52 = vld [vmem:[#allocation3] sm:$0xff]
    %v53 = vld [vmem:[#allocation3 + $0x8] sm:$0xff]
    %v54 = vld [vmem:[#allocation6] sm:$0xff]
    %v55 = vld [vmem:[#allocation6 + $0x8] sm:$0xff]
    %v56 = vld [vmem:[#allocation6 + $0x10] sm:$0xff]
    %v57 = vld [vmem:[#allocation6 + $0x18] sm:$0xff]
    %vm58 = vcmask 261120
    %v60 = vsel %vm58, %v52, 0
    %v63 = vsel %vm58, %v53, 0
    %65 = vmatprep.subr.mxu0 0.0
    %66 = vmatpush1.msra.mxu0 %v54
    %67 = vmatprep.subr.mxu0 0.0
    %68 = vmatpush1.msra.mxu0 %v55
    %69 = vmatprep.subr.mxu0 0.0
    %70 = vmatpush1.msra.mxu0 %v56
    %71 = vmatprep.subr.mxu0 0.0
    %72 = vmatpush1.msra.mxu0 %v57
    %73 = vmatprep.subr.mxu0 0.0
    %74 = vmatpush1.msra.mxu0 0.0
    %75 = vmatprep.subr.mxu0 0.0
    %76 = vmatpush1.msra.mxu0 0.0
    %77 = vmatprep.subr.mxu0 0.0
    %78 = vmatpush1.msra.mxu0 0.0
    %79 = vmatprep.subr.mxu0 0.0
    %80 = vmatpush1.msra.mxu0 0.0
    %81 = vmatprep.subr.mxu0 0.0
    %82 = vmatpush1.msra.mxu0 0.0
    %83 = vmatprep.subr.mxu0 0.0
    %84 = vmatpush1.msra.mxu0 0.0
    %85 = vmatprep.subr.mxu0 0.0
    %86 = vmatpush1.msra.mxu0 0.0
    %87 = vmatprep.subr.mxu0 0.0
    %88 = vmatpush1.msra.mxu0 0.0
    %89 = vmatprep.subr.mxu0 0.0
    %90 = vmatpush1.msra.mxu0 0.0
    %91 = vmatprep.subr.mxu0 0.0
    %92 = vmatpush1.msra.mxu0 0.0
    %93 = vmatprep.subr.mxu0 0.0
    %94 = vmatpush1.msra.mxu0 0.0
    %95 = vmatprep.subr.mxu0 0.0
    %96 = vmatpush1.msra.mxu0 0.0
    %97 = vmatprep.subr.mxu0 0.0
    %98 = vmatpush1.msra.mxu0 0.0
    %99 = vmatprep.subr.mxu0 0.0
    %100 = vmatpush1.msra.mxu0 0.0
    %101 = vmatprep.subr.mxu0 0.0
    %102 = vmatpush1.msra.mxu0 0.0
    %103 = vmatprep.subr.mxu0 0.0
    %104 = vmatpush1.msra.mxu0 0.0
    %105 = vmatprep.subr.mxu0 0.0
    %106 = vmatpush1.msra.mxu0 0.0
    %107 = vmatprep.subr.mxu0 0.0
    %108 = vmatpush1.msra.mxu0 0.0
    %109 = vmatprep.subr.mxu0 0.0
    %110 = vmatpush1.msra.mxu0 0.0
    %111 = vmatprep.subr.mxu0 0.0
    %112 = vmatpush1.msra.mxu0 0.0
    %113 = vmatprep.subr.mxu0 0.0
    %114 = vmatpush1.msra.mxu0 0.0
    %115 = vmatprep.subr.mxu0 0.0
    %116 = vmatpush1.msra.mxu0 0.0
    %117 = vmatprep.subr.mxu0 0.0
    %118 = vmatpush1.msra.mxu0 0.0
    %119 = vmatprep.subr.mxu0 0.0
    %120 = vmatpush1.msra.mxu0 0.0
    %121 = vmatprep.subr.mxu0 0.0
    %122 = vmatpush1.msra.mxu0 0.0
    %123 = vmatprep.subr.mxu0 0.0
    %124 = vmatpush1.msra.mxu0 0.0
    %125 = vmatprep.subr.mxu0 0.0
    %126 = vmatpush1.msra.mxu0 0.0
    %127 = vmatprep.subr.mxu0 0.0
    %128 = vmatpush1.msra.mxu0 0.0
    %129 = vmatprep.mubr.f32.mxu0 0.0
    %130 = vmatmul.mubr.f32.gmra.mrb[0].mxu0 %v60
    %v131 = vpop.f32.mrb[0].mxu0
    %v132 = vadd.f32 0.0, %v131
    %v133 = vpop.f32.mrb[0].mxu0
    %134 = vmatprep.mubr.f32.mxu0 0.0
    %135 = vmatmul.mubr.f32.gmra.mrb[0].mxu0 %v63
    %v136 = vpop.f32.mrb[0].mxu0
    %v137 = vadd.f32 0.0, %v136
    %v138 = vpop.f32.mrb[0].mxu0
    %139 = vdwg.mxu0
    %v140 = vadd.f32 %v50, %v132
    %v141 = vadd.f32 %v51, %v137
    %142 = vst.msk [vmem:[#allocation2] sm:$0xff] %vm58, %v140
    %143 = vst.msk [vmem:[#allocation2 + $0x8] sm:$0xff] %vm58, %v141
    // Predicated region
    $region26: #{tpu_custom_call.1} parent=1 // pred_check
      %p144 = pneg %p43
    $region27: #{tpu_custom_call.1} parent=1 // pred_check_branch
      %146 = sbr.rel (%p144) target = $region29
    $region28: #{tpu_custom_call.1} parent=1 // pred_region
      %v147 = vld [vmem:[#allocation2] sm:$0xff]
      %v148 = vld [vmem:[#allocation2 + $0x8] sm:$0xff]
      %v149 = vld [vmem:[%s2] sm:$0x1]
      %v151 = vlaneseq
      %v152 = vshrl.u32 %v151, 7
      %v153 = vsub.s32 0, %v152
      %v154 = vrot.slane %v149, %v153
      %v156 = vadd.f32 %v147, %v154
      %v157 = vadd.f32 %v148, %v154
      %158 = vst.msk [vmem:[#allocation8] sm:$0xff] %vm58, %v156
      %159 = vst.msk [vmem:[#allocation8 + $0x8] sm:$0xff] %vm58, %v157
    $region29: #{tpu_custom_call.1} parent=1 // pred_fallthru
      _
    // Predicated region
    $region30: #{tpu_custom_call.1} parent=1 // pred_check
      _
    $region31: #{tpu_custom_call.1} parent=1 // pred_check_branch
      %161 = sbr.rel (0) target = $region33
    $region32: #{tpu_custom_call.1} parent=1 // pred_region
      %s163 = ssub.s32 256, 256
      %164 = vsyncadd [#allocation5], %s163
      %s165 = sshll.u32 [#allocation8], 4
      %s166 = int_to_ptr.vmem [resolvable:$true] %s165
      %171 = dma.vmem_to_hbm [thread:$0]  %s166, 256, %s3, [#allocation5], 128, 128, 8
    $region33: #{tpu_custom_call.1} parent=1 // pred_fallthru
      _
    // Predicated region
    $region34: #{tpu_custom_call.1} parent=1 // pred_check
      _
    $region35: #{tpu_custom_call.1} parent=1 // pred_check_branch
      %173 = sbr.rel (0) target = $region37
    $region36: #{tpu_custom_call.1} parent=1 // pred_region
      %174 = dma.done [#allocation5], 256
    $region37: #{tpu_custom_call.1} parent=1 // pred_fallthru
      _
    %175 = vsyncpa [#allocation4], 1
    %176 = vsyncpa [#allocation7], 1
    %177 = vsyncpa [#allocation5], 1

</llo_original>
